<compile_context>
chip_gen: v6e
topology: v6e:2x2x1
jax: 0.10.0
libtpu: 0.0.40
codegen_flags: <defaults>
</compile_context>

<pallas_src>
import functools

import jax
import jax.numpy as jnp
from jax.experimental import pallas as pl
from jax.experimental.pallas import tpu as pltpu


def _round_up(a, b):
    return ((a + b - 1) // b) * b


def _sublane(dtype):
    # Sublane packing of the second-minor dim: 8 rows for 32-bit, 16 for
    # 16-bit, 32 for 8-bit dtypes.
    return {4: 8, 2: 16, 1: 32}.get(jnp.dtype(dtype).itemsize, 8)


def _vmem_capacity_bytes():
    try:
        return int(pltpu.get_tpu_info().vmem_capacity_bytes)
    except Exception:                      # query unavailable -> be conservative
        return 64 * 1024 * 1024            # v7x per-TensorCore VMEM


def _pad_kernel_nchw(x_ref, o_ref, *, top, bottom, left, right):
    """NCHW layout: block (tile_nc, H, W) -> (tile_nc, Ho, Wo).

    Zero only the border strips and write the interior exactly once (no
    zero-everything-then-overwrite, which doubles interior store traffic).
    """
    T, Ho, Wo = o_ref.shape
    H = Ho - top - bottom
    W = Wo - left - right
    dt = o_ref.dtype
    if top:
        o_ref[:, :top, :] = jnp.zeros((T, top, Wo), dt)
    if bottom:
        o_ref[:, top + H:, :] = jnp.zeros((T, bottom, Wo), dt)
    if left:
        o_ref[:, top:top + H, :left] = jnp.zeros((T, H, left), dt)
    if right:
        o_ref[:, top:top + H, left + W:] = jnp.zeros((T, H, right), dt)
    o_ref[:, top:top + H, left:left + W] = x_ref[...]


def _pad_kernel_cl(x_ref, o_ref, *, top, bottom, left, right):
    """Channel-last layout: block (H, W, tile_nc) -> (Ho, Wo, tile_nc).

    The fused N*C axis sits on the lane (minor) dim, so every store is
    lane-dense; the H/W padding is pure major/sublane placement.
    """
    Ho, Wo, T = o_ref.shape
    H = Ho - top - bottom
    W = Wo - left - right
    dt = o_ref.dtype
    if top:
        o_ref[:top, :, :] = jnp.zeros((top, Wo, T), dt)
    if bottom:
        o_ref[top + H:, :, :] = jnp.zeros((bottom, Wo, T), dt)
    if left:
        o_ref[top:top + H, :left, :] = jnp.zeros((H, left, T), dt)
    if right:
        o_ref[top:top + H, left + W:, :] = jnp.zeros((H, right, T), dt)
    o_ref[top:top + H, left:left + W, :] = x_ref[...]


def custom_pad(x, left, right, top, bottom):
    """Pallas equivalent of CustomPad.forward: zero-pads the last two dims."""
    N, C, H, W = x.shape
    Ho = H + top + bottom
    Wo = W + left + right
    if (left, right, top, bottom) == (0, 0, 0, 0):
        return x

    NC = N * C
    dtype = x.dtype
    item = jnp.dtype(dtype).itemsize
    sub = _sublane(dtype)

    vmem_cap = _vmem_capacity_bytes()
    # Generation-aware double-buffered working-set target.
    ws_target = 32 * 2**20 if vmem_cap >= 96 * 2**20 else 16 * 2**20
    min_steps = 4   # keep >= min(axis, 4) grid steps: pipelining + megacore

    bytes_accessed = (NC * H * W + NC * Ho * Wo) * item
    cost = pl.CostEstimate(flops=0, transcendentals=0,
                           bytes_accessed=bytes_accessed)

    def _compiler_params(working_set_bytes):
        limit = max(32 * 2**20, working_set_bytes + 8 * 2**20)
        limit = min(limit, max(vmem_cap - 8 * 2**20, 16 * 2**20))
        return pltpu.CompilerParams(
            dimension_semantics=("parallel",),
            vmem_limit_bytes=int(limit),
        )

    # ---- Lane-dense channel-last path: narrow W but large fused NC axis. ----
    # Per-128-channel layout-aware footprint of one (in + out) block.
    per_group = (H * _round_up(W, sub) + Ho * _round_up(Wo, sub)) * 128 * item
    if Wo < 128 and NC >= 256 and 2 * per_group <= ws_target:
        n_grp = pl.cdiv(NC, 128)
        grp_budget = max(1, ws_target // (2 * per_group))
        grp_steps = max(1, n_grp // min(n_grp, min_steps))
        tile_grp = int(max(1, min(n_grp, grp_budget, grp_steps)))
        tile_nc = tile_grp * 128
        # NOTE: if NC % tile_nc != 0, out-of-range reads/writes of the last
        # block are clipped by the BlockSpec pipeline; results stay correct.
        xt = jnp.transpose(x.reshape(NC, H, W), (1, 2, 0))       # (H, W, NC)
        out_t = pl.pallas_call(
            functools.partial(_pad_kernel_cl, top=top, bottom=bottom,
                              left=left, right=right),
            out_shape=jax.ShapeDtypeStruct((Ho, Wo, NC), dtype),
            grid=(pl.cdiv(NC, tile_nc),),
            in_specs=[pl.BlockSpec((H, W, tile_nc), lambda i: (0, 0, i))],
            out_specs=pl.BlockSpec((Ho, Wo, tile_nc), lambda i: (0, 0, i)),
            compiler_params=_compiler_params(2 * tile_grp * per_group),
            cost_estimate=cost,
        )(xt)
        return jnp.transpose(out_t, (2, 0, 1)).reshape(N, C, Ho, Wo)

    # ---- Default NCHW path: fuse (N, C) and tile only that axis. ----
    # Layout-aware per-slice footprint (lane rounded to 128, sublane to dtype
    # packing) for one input slice + one output slice.
    per_slice = (_round_up(H, sub) * _round_up(W, 128)
                 + _round_up(Ho, sub) * _round_up(Wo, 128)) * item
    tile_budget = max(1, ws_target // (2 * per_slice))
    tile_steps = max(1, NC // min(NC, min_steps))
    tile_nc = int(max(1, min(NC, tile_budget, tile_steps)))
    # NOTE: if NC % tile_nc != 0, out-of-range reads/writes of the last block
    # are clipped by the BlockSpec pipeline; results stay correct.
    # TODO(synk): for very large planes (2*per_slice > ws_target at tile_nc=1)
    # add a second grid axis tiling H (top/bottom strips gated with pl.when) so
    # the per-step slab stays within v7x's 64 MiB VMEM.
    x2 = x.reshape(NC, H, W)
    out = pl.pallas_call(
        functools.partial(_pad_kernel_nchw, top=top, bottom=bottom,
                          left=left, right=right),
        out_shape=jax.ShapeDtypeStruct((NC, Ho, Wo), dtype),
        grid=(pl.cdiv(NC, tile_nc),),
        in_specs=[pl.BlockSpec((tile_nc, H, W), lambda i: (i, 0, 0))],
        out_specs=pl.BlockSpec((tile_nc, Ho, Wo), lambda i: (i, 0, 0)),
        compiler_params=_compiler_params(2 * tile_nc * per_slice),
        cost_estimate=cost,
    )(x2)
    return out.reshape(N, C, Ho, Wo)


if __name__ == "__main__":
    # Module "parameters" (constructor args) — deterministic, in-script.
    LEFT, RIGHT, TOP, BOTTOM = 1, 2, 3, 4

    k1, k2 = jax.random.split(jax.random.PRNGKey(0))

    # Primary check: small NCHW input (exercises the default NCHW path).
    x = jax.random.normal(k1, (2, 4, 16, 16), dtype=jnp.float32)
    out = jax.block_until_ready(custom_pad(x, LEFT, RIGHT, TOP, BOTTOM))
    ref = jnp.pad(x, ((0, 0), (0, 0), (TOP, BOTTOM), (LEFT, RIGHT)))
    assert out.shape == ref.shape, (out.shape, ref.shape)
    assert jnp.array_equal(out, ref), "mismatch vs reference (NCHW path)"

    # Secondary check (still small): enough channels to trigger the lane-dense
    # channel-last path so it is not untested dead code.
    x_big = jax.random.normal(k2, (2, 128, 16, 16), dtype=jnp.float32)
    out_big = jax.block_until_ready(custom_pad(x_big, LEFT, RIGHT, TOP, BOTTOM))
    ref_big = jnp.pad(x_big, ((0, 0), (0, 0), (TOP, BOTTOM), (LEFT, RIGHT)))
    assert out_big.shape == ref_big.shape, (out_big.shape, ref_big.shape)
    assert jnp.array_equal(out_big, ref_big), "mismatch vs reference (CL path)"

    print("KERNEL_OK")
</pallas_src>

<mosaic_0001>
module attributes {stable_mosaic.version = 11 : i64} {
  func.func @_pad_kernel_nchw(%arg0: i32, %arg1: memref<2x16x16xf32, #tpu.memory_space<vmem>>, %arg2: memref<2x23x19xf32, #tpu.memory_space<vmem>>) attributes {dimension_semantics = [#tpu.dimension_semantics<parallel>], iteration_bounds = array<i64: 4>, scalar_prefetch = 0 : i64, scratch_operands = 0 : i64, tpu.core_type = #tpu.core_type<tc>, window_params = [{transform_indices = @transform_0, window_bounds = array<i64: 2, 16, 16>}, {transform_indices = @transform_1, window_bounds = array<i64: 2, 23, 19>}]} {
    %cst = arith.constant 0.000000e+00 : f32
    %0 = vector.broadcast %cst : f32 to vector<2x3x19xf32>
    %c0 = arith.constant 0 : index
    %c0_0 = arith.constant 0 : index
    %c0_1 = arith.constant 0 : index
    %1 = vector.load %arg2[%c0, %c0_0, %c0_1] : memref<2x23x19xf32, #tpu.memory_space<vmem>>, vector<2x3x19xf32>
    tpu.vector_store %arg2[%c0, %c0_0, %c0_1], %0 {strides = array<i32>} : memref<2x23x19xf32, #tpu.memory_space<vmem>>, vector<2x3x19xf32>,
    %cst_2 = arith.constant 0.000000e+00 : f32
    %2 = vector.broadcast %cst_2 : f32 to vector<2x4x19xf32>
    %c0_3 = arith.constant 0 : index
    %c19 = arith.constant 19 : index
    %c0_4 = arith.constant 0 : index
    %3 = vector.load %arg2[%c0_3, %c19, %c0_4] : memref<2x23x19xf32, #tpu.memory_space<vmem>>, vector<2x4x19xf32>
    tpu.vector_store %arg2[%c0_3, %c19, %c0_4], %2 {strides = array<i32>} : memref<2x23x19xf32, #tpu.memory_space<vmem>>, vector<2x4x19xf32>,
    %cst_5 = arith.constant 0.000000e+00 : f32
    %4 = vector.broadcast %cst_5 : f32 to vector<2x16x1xf32>
    %c0_6 = arith.constant 0 : index
    %c3 = arith.constant 3 : index
    %c0_7 = arith.constant 0 : index
    %5 = vector.load %arg2[%c0_6, %c3, %c0_7] : memref<2x23x19xf32, #tpu.memory_space<vmem>>, vector<2x16x1xf32>
    tpu.vector_store %arg2[%c0_6, %c3, %c0_7], %4 {strides = array<i32>} : memref<2x23x19xf32, #tpu.memory_space<vmem>>, vector<2x16x1xf32>,
    %cst_8 = arith.constant 0.000000e+00 : f32
    %6 = vector.broadcast %cst_8 : f32 to vector<2x16x2xf32>
    %c0_9 = arith.constant 0 : index
    %c3_10 = arith.constant 3 : index
    %c17 = arith.constant 17 : index
    %7 = vector.load %arg2[%c0_9, %c3_10, %c17] : memref<2x23x19xf32, #tpu.memory_space<vmem>>, vector<2x16x2xf32>
    tpu.vector_store %arg2[%c0_9, %c3_10, %c17], %6 {strides = array<i32>} : memref<2x23x19xf32, #tpu.memory_space<vmem>>, vector<2x16x2xf32>,
    %c0_11 = arith.constant 0 : index
    %c0_12 = arith.constant 0 : index
    %c0_13 = arith.constant 0 : index
    %8 = vector.load %arg1[%c0_11, %c0_12, %c0_13] : memref<2x16x16xf32, #tpu.memory_space<vmem>>, vector<2x16x16xf32>
    %c0_14 = arith.constant 0 : index
    %c3_15 = arith.constant 3 : index
    %c1 = arith.constant 1 : index
    %9 = vector.load %arg2[%c0_14, %c3_15, %c1] : memref<2x23x19xf32, #tpu.memory_space<vmem>>, vector<2x16x16xf32>
    tpu.vector_store %arg2[%c0_14, %c3_15, %c1], %8 {strides = array<i32>} : memref<2x23x19xf32, #tpu.memory_space<vmem>>, vector<2x16x16xf32>,
    return
  }
  func.func @transform_0(%arg0: i32) -> (i32, i32, i32) {
    %c0_i32 = arith.constant 0 : i32
    %c0_i32_0 = arith.constant 0 : i32
    %c0_i32_1 = arith.constant 0 : i32
    return %arg0, %c0_i32, %c0_i32_0 : i32, i32, i32
  }
  func.func @transform_1(%arg0: i32) -> (i32, i32, i32) {
    %c0_i32 = arith.constant 0 : i32
    %c0_i32_0 = arith.constant 0 : i32
    %c0_i32_1 = arith.constant 0 : i32
    return %arg0, %c0_i32, %c0_i32_0 : i32, i32, i32
  }
}

</mosaic_0001>

<llo_original>
// kernel: tpu_custom_call.1
$region0: #{tpu_custom_call.1}
  #allocation0 [shape = 'u32[]', space=smem, size = 0x4, offset = 0x4, fixed_abs, tag = 'smem constant byte address 0x4 - core index']
  #allocation1 [shape = 'u32[144,128]{1,0:T(1,128)}', space=vmem, size = 0x12000, scoped, tag = 'internal scratch']
  %s0 = inlined_call_operand.hbm [shape: f32[8,16,16], index: 0, kind: input, shape index: {}]
  %s1 = inlined_call_operand.vmem [shape: f32[8,23,19], index: 1, kind: output, shape index: {}]
  %s2 = sld [smem:[#allocation0]]
  $region41: #{tpu_custom_call.1} parent=0
    _
  %s4 = ssub.s32 1, %s2
  %s5 = scalar_select 0, %s4, %s2
  $region1: #{tpu_custom_call.1} parent=0
    #allocation2 [shape = 'u8[32768]{0}', space=vmem, size = 0x8000, scoped, tag = 'input window, operand 0']
    #allocation3 [shape = 's32[2]{0}', space=sflag, size = 0x8, scoped, tag = 'scoped memory for tpu_custom_call.1']
    %6 = vsyncpa [#allocation3], 0
    %s7 = scalar_lea.sflag [#allocation3], 1
    %8 = vsyncpa %s7, 0
    loop: start=0, step=1, limit=6
    $region2: #{tpu_custom_call.1} parent=1 // loop_pre_header
      _
    $region3: #{tpu_custom_call.1} parent=1 // loop_header
      %s10 = sphi 0, %s14
      %p11 = scmp.ge.s32.totalorder %s10, 6
      %s20 = sphi 0, %s22
      %s23 = sphi 0, %s20
      %s24 = sphi 0, %s23
      %s40 = sphi 0, %s24
      %s46 = sphi 0, %s48
      %s49 = sphi 0, %s46
      %s50 = sphi 0, %s49
      %s66 = sphi 0, %s50
    $region4: #{tpu_custom_call.1} parent=1 // loop_header_branch
      %13 = sbr.rel (%p11) target = $region8
    $region5: #{tpu_custom_call.1} parent=1 // loop_body
      %s15 = ssub.s32 %s10, 1
      %s16 = ssub.s32 %s10, 2
      %s17 = sadd.s32 %s10, 1
      %s18 = ssub.s32 %s10, %s17
      %p19 = scmp.eq.s32.totalorder %s18, 0
      %s21 = sadd.s32 %s20, 1
      %s22 = scalar_select %p19, %s20, %s21
      %p25 = pneg %p19
      %p26 = scmp.eq.s32.totalorder %s10, 3
      %p27 = por %p25, %p26
      %p28 = scmp.ne.s32.totalorder %s20, %s23
      %p29 = scmp.eq.s32.totalorder %s10, 0
      %p30 = por %p28, %p29
      %p31 = scmp.ne.s32.totalorder %s20, %s23
      %p32 = scmp.eq.s32.totalorder %s15, 3
      %p33 = por %p31, %p32
      %p34 = scmp.ne.s32.totalorder %s23, %s24
      %p35 = scmp.eq.s32.totalorder %s15, 0
      %p36 = por %p34, %p35
      %p37 = scmp.ne.s32.totalorder %s23, %s24
      %p38 = scmp.eq.s32.totalorder %s16, 3
      %p39 = por %p37, %p38
      %p41 = scmp.ne.s32.totalorder %s24, %s40
      %p42 = scmp.eq.s32.totalorder %s16, 0
      %p43 = por %p41, %p42
      %s44 = ssub.s32 %s10, %s17
      %p45 = scmp.eq.s32.totalorder %s44, 0
      %s47 = sadd.s32 %s46, 1
      %s48 = scalar_select %p45, %s46, %s47
      %p51 = pneg %p45
      %p52 = scmp.eq.s32.totalorder %s10, 3
      %p53 = por %p51, %p52
      %p54 = scmp.ne.s32.totalorder %s46, %s49
      %p55 = scmp.eq.s32.totalorder %s10, 0
      %p56 = por %p54, %p55
      %p57 = scmp.ne.s32.totalorder %s46, %s49
      %p58 = scmp.eq.s32.totalorder %s15, 3
      %p59 = por %p57, %p58
      %p60 = scmp.ne.s32.totalorder %s49, %s50
      %p61 = scmp.eq.s32.totalorder %s15, 0
      %p62 = por %p60, %p61
      %p63 = scmp.ne.s32.totalorder %s49, %s50
      %p64 = scmp.eq.s32.totalorder %s16, 3
      %p65 = por %p63, %p64
      %p67 = scmp.ne.s32.totalorder %s50, %s66
      %p68 = scmp.eq.s32.totalorder %s16, 0
      %p69 = por %p67, %p68
      %p70 = scmp.le.s32.totalorder 1, %s10
      %p71 = scmp.lt.s32.totalorder %s10, 5
      %p72 = pnand %p70, %p71
      %p73 = pneg %p72
      // Predicated region
      $region9: #{tpu_custom_call.1} parent=5 // pred_check
        _
      $region10: #{tpu_custom_call.1} parent=5 // pred_check_branch
        %75 = sbr.rel (%p72) target = $region12
      $region11: #{tpu_custom_call.1} parent=5 // pred_region
        %s76 = ssub.s32 %s10, 1
      $region12: #{tpu_custom_call.1} parent=5 // pred_fallthru
        _
      %p77 = scmp.lt.s32.totalorder %s10, 4
      // Predicated region
      $region13: #{tpu_custom_call.1} parent=5 // pred_check
        %p78 = pneg %p77
      $region14: #{tpu_custom_call.1} parent=5 // pred_check_branch
        %80 = sbr.rel (%p78) target = $region16
      $region15: #{tpu_custom_call.1} parent=5 // pred_region
        // Predicated region
        $region17: #{tpu_custom_call.1} parent=15 // pred_check
          %p81 = pneg %p30
        $region18: #{tpu_custom_call.1} parent=15 // pred_check_branch
          %83 = sbr.rel (%p81) target = $region20
        $region19: #{tpu_custom_call.1} parent=15 // pred_region
          %s84 = sand.u32 %s20, 1
          %s85 = scalar_lea.sflag [#allocation3], %s84
          %s86 = sand.u32 %s20, 1
          %s87 = smul.addr %s86, 32
          %s88 = scalar_lea.vmem [#allocation2], %s87
          %s89 = smul.u32 2, %s10
          %s91 = ssub.s32 512, 512
          %92 = vsyncadd %s85, %s91
          %s93 = smul.addr %s89, 2
          %s94 = smul.addr %s93, 128
          %s95 = scalar_lea.hbm %s0, %s94
          %s96 = sshll.u32 %s88, 4
          %s97 = int_to_ptr.vmem [resolvable:$true] %s96
          %102 = dma.hbm_to_vmem [thread:$0]  %s95, 512, %s97, %s85, 128, 128, 8
        $region20: #{tpu_custom_call.1} parent=15 // pred_fallthru
          _
      $region16: #{tpu_custom_call.1} parent=5 // pred_fallthru
        _
      %p103 = scmp.le.s32.totalorder 1, %s10
      %p104 = scmp.lt.s32.totalorder %s10, 5
      %p105 = pnand %p103, %p104
      %p106 = pneg %p105
      // Predicated region
      $region21: #{tpu_custom_call.1} parent=5 // pred_check
        _
      $region22: #{tpu_custom_call.1} parent=5 // pred_check_branch
        %108 = sbr.rel (%p105) target = $region24
      $region23: #{tpu_custom_call.1} parent=5 // pred_region
        %s109 = ssub.s32 %s10, 1
        %s110 = sand.u32 %s23, 1
        %s111 = scalar_lea.sflag [#allocation3], %s110
        %s112 = sand.u32 %s23, 1
        %s113 = smul.addr %s112, 32
        %s114 = scalar_lea.vmem [#allocation2], %s113
        // Predicated region
        $region25: #{tpu_custom_call.1} parent=23 // pred_check
          %p115 = pneg %p36
        $region26: #{tpu_custom_call.1} parent=23 // pred_check_branch
          %117 = sbr.rel (%p115) target = $region28
        $region27: #{tpu_custom_call.1} parent=23 // pred_region
          %118 = dma.done %s111, 512
        $region28: #{tpu_custom_call.1} parent=23 // pred_fallthru
          _
        %s119 = sand.u32 %s23, 1
        %s120 = scalar_lea.sflag [#allocation3], %s119
        %s121 = sand.u32 %s23, 1
        %s122 = smul.addr %s121, 32
        %s123 = scalar_lea.vmem [#allocation2], %s122
        %p124 = pneg %p36
        %p125 = pneg %p33
        %p126 = pneg %p62
        %p127 = pneg %p59
        %s128 = smul.u32 2, %s15
        %p129 = scmp.lt.s32.totalorder %s128, 7
        %s130 = scalar_select %p129, %s128, 7
        %s131 = smul.addr %s130, 3
        %s132 = smul.addr %s131, 8
        %s133 = scalar_lea.vmem %s1, %s132
        %s134 = smul.u32 2, %s15
        %s135 = smul.u32 2, %s15
        %p136 = scmp.lt.s32.totalorder %s135, 7
        %s137 = scalar_select %p136, %s135, 7
        %s138 = smul.addr %s137, 3
        %s139 = smul.addr %s138, 8
        %s140 = scalar_lea.vmem %s1, %s139
        %s141 = smul.u32 2, %s15
        %vm142 = vcmask 149504
        %143 = vst.msk [vmem:[%s140] sm:$0x7] %vm142, 0.0
        %144 = vst.msk [vmem:[%s140 + $0x18] sm:$0x7] %vm142, 0.0
        %vm145 = vcmask 150528
        %146 = vst.msk [vmem:[%s140 + $0x13] sm:$0xf] %vm145, 0.0
        %147 = vst.msk [vmem:[%s140 + $0x2b] sm:$0xf] %vm145, 0.0
        %vm148 = vcmask 7168
        %149 = vst.msk [vmem:[%s140 + $0x3] sm:$0xff] %vm148, 0.0
        %150 = vst.msk [vmem:[%s140 + $0xb] sm:$0xff] %vm148, 0.0
        %151 = vst.msk [vmem:[%s140 + $0x1b] sm:$0xff] %vm148, 0.0
        %152 = vst.msk [vmem:[%s140 + $0x23] sm:$0xff] %vm148, 0.0
        %vm153 = vcmask 154760
        %154 = vst.msk [vmem:[%s140 + $0x3] sm:$0xff] %vm153, 0.0
        %155 = vst.msk [vmem:[%s140 + $0xb] sm:$0xff] %vm153, 0.0
        %156 = vst.msk [vmem:[%s140 + $0x1b] sm:$0xff] %vm153, 0.0
        %157 = vst.msk [vmem:[%s140 + $0x23] sm:$0xff] %vm153, 0.0
        %v158 = vld [vmem:[%s114] sm:$0xff]
        %v159 = vld [vmem:[%s114 + $0x8] sm:$0xff]
        %v160 = vld [vmem:[%s114 + $0x10] sm:$0xff]
        %v161 = vld [vmem:[%s114 + $0x18] sm:$0xff]
        %166 = vrot.lane.b32.xlu0 %v158, 1
        %v167 = vpop.permute.xlu0 %166
        %168 = vrot.lane.b32.xlu0 %v159, 1
        %v169 = vpop.permute.xlu0 %168
        %170 = vrot.lane.b32.xlu0 %v160, 1
        %v171 = vpop.permute.xlu0 %170
        %172 = vrot.lane.b32.xlu0 %v161, 1
        %v173 = vpop.permute.xlu0 %172
        %vm178 = vcmask 138248
        %179 = vst.msk [vmem:[%s140 + $0x3] sm:$0xff] %vm178, %v167
        %180 = vst.msk [vmem:[%s140 + $0xb] sm:$0xff] %vm178, %v169
        %181 = vst.msk [vmem:[%s140 + $0x1b] sm:$0xff] %vm178, %v171
        %182 = vst.msk [vmem:[%s140 + $0x23] sm:$0xff] %vm178, %v173
        %s183 = smul.u32 2, %s15
        %p184 = scmp.lt.s32.totalorder %s183, 7
        %s185 = scalar_select %p184, %s183, 7
        %s186 = smul.addr %s185, 3
        %s187 = smul.addr %s186, 8
        %s188 = scalar_lea.vmem %s1, %s187
        // Predicated region
        $region29: #{tpu_custom_call.1} parent=23 // pred_check
          %p189 = pneg %p59
        $region30: #{tpu_custom_call.1} parent=23 // pred_check_branch
          %191 = sbr.rel (%p189) target = $region32
        $region31: #{tpu_custom_call.1} parent=23 // pred_region
          %s192 = smul.u32 2, %s15
        $region32: #{tpu_custom_call.1} parent=23 // pred_fallthru
          _
      $region24: #{tpu_custom_call.1} parent=5 // pred_fallthru
        _
      %p193 = scmp.le.s32.totalorder 2, %s10
      // Predicated region
      $region33: #{tpu_custom_call.1} parent=5 // pred_check
        %p194 = pneg %p193
      $region34: #{tpu_custom_call.1} parent=5 // pred_check_branch
        %196 = sbr.rel (%p194) target = $region36
      $region35: #{tpu_custom_call.1} parent=5 // pred_region
        %s197 = ssub.s32 %s10, 2
        // Predicated region
        $region37: #{tpu_custom_call.1} parent=35 // pred_check
          %p198 = pneg %p65
        $region38: #{tpu_custom_call.1} parent=35 // pred_check_branch
          %200 = sbr.rel (%p198) target = $region40
        $region39: #{tpu_custom_call.1} parent=35 // pred_region
          %s201 = smul.u32 2, %s16
          %p202 = scmp.lt.s32.totalorder %s201, 7
          %s203 = scalar_select %p202, %s201, 7
          %s204 = smul.addr %s203, 3
          %s205 = smul.addr %s204, 8
          %s206 = scalar_lea.vmem %s1, %s205
        $region40: #{tpu_custom_call.1} parent=35 // pred_fallthru
          _
      $region36: #{tpu_custom_call.1} parent=5 // pred_fallthru
        _
    $region6: #{tpu_custom_call.1} parent=1 // loop_footer
      %s14 = sadd.s32 1, %s10
    $region7: #{tpu_custom_call.1} parent=1 // loop_footer_branch
      %9 = sbr.rel target = $region3
    $region8: #{tpu_custom_call.1} parent=1 // loop_exit
      _
    %207 = vsyncpa [#allocation3], 1
    %s208 = scalar_lea.sflag [#allocation3], 1
    %209 = vsyncpa %s208, 1

</llo_original>
